<compile_context>
chip_gen: v7x
topology: tpu7x:2x2x1
jax: 0.10.0
libtpu: 0.0.40
codegen_flags: <defaults>
</compile_context>

<pallas_src>
import jax
import jax.numpy as jnp
from jax.experimental import pallas as pl
from jax.experimental.pallas import tpu as pltpu


def _vmem_spec():
    return pl.BlockSpec(memory_space=pltpu.MemorySpace.VMEM)


# ---------------- fused Pallas kernel (entire forward) ----------------

def gcn_forward_kernel(idx_ref, emb_ref, a_ref,
                       w1_ref, b1_ref, w2_ref, b2_ref,
                       pool_t_ref, wl_ref, bl_ref, o_ref):
    n = idx_ref.shape[0]
    r = emb_ref.shape[0]

    # --- nn.Embedding(x.squeeze()) as a one-hot matmul (in-kernel gather) ---
    idx = idx_ref[...]                                          # (N, 1) int32
    iota_r = jax.lax.broadcasted_iota(jnp.int32, (n, r), 1)     # (N, R)
    onehot = (idx == iota_r).astype(jnp.float32)                # (N, R)
    h0 = jnp.dot(onehot, emb_ref[...],
                 preferred_element_type=jnp.float32)            # (N, E)

    # --- conv1 + ReLU:  relu(A_norm @ (h0 @ W1) + b1) ---
    xw1 = jnp.dot(h0, w1_ref[...], preferred_element_type=jnp.float32)
    h1 = jnp.maximum(
        jnp.dot(a_ref[...], xw1, preferred_element_type=jnp.float32)
        + b1_ref[...], 0.0)                                     # (N, H)

    # --- conv2 + ReLU ---
    xw2 = jnp.dot(h1, w2_ref[...], preferred_element_type=jnp.float32)
    h2 = jnp.maximum(
        jnp.dot(a_ref[...], xw2, preferred_element_type=jnp.float32)
        + b2_ref[...], 0.0)                                     # (N, H)

    # --- head, reassociated: per-node scalar first, then mean-pool ---
    # lin(mean_g(h2)) == mean_g(h2 @ w_lin) + b_lin  (linear => exact)
    hv = jnp.dot(h2, wl_ref[...], preferred_element_type=jnp.float32)  # (N, 1)
    # pool_t[n, g] = 1/|graph g| if node n in graph g else 0  -> (N, G)
    pooled = jnp.sum(hv * pool_t_ref[...], axis=0, keepdims=True)      # (1, G)
    o_ref[...] = pooled + bl_ref[...]                                  # lane-dense (1, G)


def gcn_forward_fused(idx, emb, a_norm, w1, b1, w2, b2, pool_t, w_lin, b_lin):
    num_graphs = pool_t.shape[1]
    return pl.pallas_call(
        gcn_forward_kernel,
        out_shape=jax.ShapeDtypeStruct((1, num_graphs), jnp.float32),
        in_specs=[_vmem_spec()] * 10,
        out_specs=_vmem_spec(),
    )(idx, emb, a_norm, w1, b1, w2, b2, pool_t, w_lin, b_lin)


# ---------------- graph-structure precompute (hoisted, not per-forward) ----

def build_norm_adj(edge_index, num_nodes):
    # PyG GCNConv default normalization: A_hat = A + I, D^{-1/2} A_hat D^{-1/2}
    # scatter-ADD so duplicate edges accumulate like PyG's gcn_norm.
    src, dst = edge_index
    a = jnp.zeros((num_nodes, num_nodes), jnp.float32)
    a = a.at[dst, src].add(1.0)                      # message flows src -> dst
    a = a + jnp.eye(num_nodes, dtype=jnp.float32)
    deg = a.sum(axis=1)
    dinv = jnp.where(deg > 0, 1.0 / jnp.sqrt(deg), 0.0)
    return a * dinv[:, None] * dinv[None, :]


def build_pool_mat_t(batch, num_nodes, num_graphs):
    # transposed mean-pool weights: (N, G), column g sums to 1 over graph g
    onehot_t = (batch[:, None] == jnp.arange(num_graphs)[None, :]).astype(jnp.float32)
    counts = onehot_t.sum(axis=0, keepdims=True)
    return onehot_t / jnp.maximum(counts, 1.0)


def precompute_graph_structure(edge_index, batch, num_nodes, num_graphs):
    # Depends only on graph topology/batch -- compute ONCE per graph, reuse
    # across forward passes (keeps the dense scatter chain off the hot path).
    a_norm = build_norm_adj(edge_index, num_nodes)
    pool_t = build_pool_mat_t(batch, num_nodes, num_graphs)
    return a_norm, pool_t


# ---------------- forward (hot path: one pallas_call) ----------------

@jax.jit
def gcn_residue_embedding_forward(params, idx, a_norm, pool_t):
    out = gcn_forward_fused(
        idx, params["emb"], a_norm,
        params["w1"], params["b1"], params["w2"], params["b2"],
        pool_t, params["w_lin"], params["b_lin"])
    return out.reshape(-1)                           # .squeeze() -> (G,)


def init_params(key, num_residues, emb_dim, hidden_dim):
    k = jax.random.split(key, 4)

    def glorot(k_, shape):
        limit = jnp.sqrt(6.0 / (shape[0] + shape[1]))
        return jax.random.uniform(k_, shape, jnp.float32, -limit, limit)

    return {
        "emb": jax.random.normal(k[0], (num_residues, emb_dim), jnp.float32),
        "w1": glorot(k[1], (emb_dim, hidden_dim)),
        "b1": jnp.zeros((1, hidden_dim), jnp.float32),
        "w2": glorot(k[2], (hidden_dim, hidden_dim)),
        "b2": jnp.zeros((1, hidden_dim), jnp.float32),
        "w_lin": glorot(k[3], (hidden_dim, 1)),
        "b_lin": jnp.zeros((1, 1), jnp.float32),
    }


if __name__ == "__main__":
    num_residues, emb_dim, hidden_dim = 20, 32, 32
    n_nodes, num_graphs = 16, 2

    key = jax.random.PRNGKey(0)
    kp, kx = jax.random.split(key)
    params = init_params(kp, num_residues, emb_dim, hidden_dim)

    # node residue indices, shape [N, 1] (forward squeezes them)
    x = jax.random.randint(kx, (n_nodes, 1), 0, num_residues, dtype=jnp.int32)

    # two chain graphs (nodes 0..7 and 8..15), undirected edges
    src, dst = [], []
    for g0 in (0, 8):
        for i in range(7):
            a, b = g0 + i, g0 + i + 1
            src += [a, b]
            dst += [b, a]
    edge_index = jnp.array([src, dst], dtype=jnp.int32)
    batch = jnp.array([0] * 8 + [1] * 8, dtype=jnp.int32)

    # graph-structure matrices: built once, reused for every forward pass
    a_norm, pool_t = precompute_graph_structure(edge_index, batch,
                                                n_nodes, num_graphs)

    out = gcn_residue_embedding_forward(params, x, a_norm, pool_t)
    out = jax.block_until_ready(out)
    assert out.shape == (num_graphs,)
    print("KERNEL_OK")
</pallas_src>

<mosaic_0001>
module attributes {stable_mosaic.version = 11 : i64} {
  func.func @gcn_forward_kernel(%arg0: memref<16x1xi32, #tpu.memory_space<vmem>>, %arg1: memref<20x32xf32, #tpu.memory_space<vmem>>, %arg2: memref<16x16xf32, #tpu.memory_space<vmem>>, %arg3: memref<32x32xf32, #tpu.memory_space<vmem>>, %arg4: memref<1x32xf32, #tpu.memory_space<vmem>>, %arg5: memref<32x32xf32, #tpu.memory_space<vmem>>, %arg6: memref<1x32xf32, #tpu.memory_space<vmem>>, %arg7: memref<16x2xf32, #tpu.memory_space<vmem>>, %arg8: memref<32x1xf32, #tpu.memory_space<vmem>>, %arg9: memref<1x1xf32, #tpu.memory_space<vmem>>, %arg10: memref<1x2xf32, #tpu.memory_space<vmem>>) attributes {dimension_semantics = [], scalar_prefetch = 0 : i64, scratch_operands = 0 : i64, tpu.core_type = #tpu.core_type<tc>} {
    %c0 = arith.constant 0 : index
    %c0_0 = arith.constant 0 : index
    %0 = vector.load %arg0[%c0, %c0_0] : memref<16x1xi32, #tpu.memory_space<vmem>>, vector<16x1xi32>
    %1 = tpu.iota {dimensions = array<i32: 1>} : vector<16x20xi32>
    %2 = vector.broadcast %0 : vector<16x1xi32> to vector<16x20xi32>
    %3 = arith.cmpi eq, %2, %1 : vector<16x20xi32>
    %4 = arith.extui %3 : vector<16x20xi1> to vector<16x20xi32>
    %5 = arith.sitofp %4 : vector<16x20xi32> to vector<16x20xf32>
    %c0_1 = arith.constant 0 : index
    %c0_2 = arith.constant 0 : index
    %6 = vector.load %arg1[%c0_1, %c0_2] : memref<20x32xf32, #tpu.memory_space<vmem>>, vector<20x32xf32>
    %cst = arith.constant dense<0.000000e+00> : vector<16x32xf32>
    %7 = tpu.matmul %5, %6, %cst {dimension_numbers = #tpu.dot_dimension_numbers<[1], [0], [0], [1], [0, 0, 1, 1], [], []>} : vector<16x20xf32>, vector<20x32xf32>, vector<16x32xf32> -> vector<16x32xf32>
    %c0_3 = arith.constant 0 : index
    %c0_4 = arith.constant 0 : index
    %8 = vector.load %arg3[%c0_3, %c0_4] : memref<32x32xf32, #tpu.memory_space<vmem>>, vector<32x32xf32>
    %cst_5 = arith.constant dense<0.000000e+00> : vector<16x32xf32>
    %9 = tpu.matmul %7, %8, %cst_5 {dimension_numbers = #tpu.dot_dimension_numbers<[1], [0], [0], [1], [0, 0, 1, 1], [], []>} : vector<16x32xf32>, vector<32x32xf32>, vector<16x32xf32> -> vector<16x32xf32>
    %c0_6 = arith.constant 0 : index
    %c0_7 = arith.constant 0 : index
    %10 = vector.load %arg2[%c0_6, %c0_7] : memref<16x16xf32, #tpu.memory_space<vmem>>, vector<16x16xf32>
    %cst_8 = arith.constant dense<0.000000e+00> : vector<16x32xf32>
    %11 = tpu.matmul %10, %9, %cst_8 {dimension_numbers = #tpu.dot_dimension_numbers<[1], [0], [0], [1], [0, 0, 1, 1], [], []>} : vector<16x16xf32>, vector<16x32xf32>, vector<16x32xf32> -> vector<16x32xf32>
    %c0_9 = arith.constant 0 : index
    %c0_10 = arith.constant 0 : index
    %12 = vector.load %arg4[%c0_9, %c0_10] : memref<1x32xf32, #tpu.memory_space<vmem>>, vector<1x32xf32>
    %13 = vector.broadcast %12 : vector<1x32xf32> to vector<16x32xf32>
    %14 = arith.addf %11, %13 : vector<16x32xf32>
    %cst_11 = arith.constant 0.000000e+00 : f32
    %15 = vector.broadcast %cst_11 : f32 to vector<16x32xf32>
    %16 = arith.maximumf %14, %15 : vector<16x32xf32>
    %c0_12 = arith.constant 0 : index
    %c0_13 = arith.constant 0 : index
    %17 = vector.load %arg5[%c0_12, %c0_13] : memref<32x32xf32, #tpu.memory_space<vmem>>, vector<32x32xf32>
    %cst_14 = arith.constant dense<0.000000e+00> : vector<16x32xf32>
    %18 = tpu.matmul %16, %17, %cst_14 {dimension_numbers = #tpu.dot_dimension_numbers<[1], [0], [0], [1], [0, 0, 1, 1], [], []>} : vector<16x32xf32>, vector<32x32xf32>, vector<16x32xf32> -> vector<16x32xf32>
    %c0_15 = arith.constant 0 : index
    %c0_16 = arith.constant 0 : index
    %19 = vector.load %arg2[%c0_15, %c0_16] : memref<16x16xf32, #tpu.memory_space<vmem>>, vector<16x16xf32>
    %cst_17 = arith.constant dense<0.000000e+00> : vector<16x32xf32>
    %20 = tpu.matmul %19, %18, %cst_17 {dimension_numbers = #tpu.dot_dimension_numbers<[1], [0], [0], [1], [0, 0, 1, 1], [], []>} : vector<16x16xf32>, vector<16x32xf32>, vector<16x32xf32> -> vector<16x32xf32>
    %c0_18 = arith.constant 0 : index
    %c0_19 = arith.constant 0 : index
    %21 = vector.load %arg6[%c0_18, %c0_19] : memref<1x32xf32, #tpu.memory_space<vmem>>, vector<1x32xf32>
    %22 = vector.broadcast %21 : vector<1x32xf32> to vector<16x32xf32>
    %23 = arith.addf %20, %22 : vector<16x32xf32>
    %cst_20 = arith.constant 0.000000e+00 : f32
    %24 = vector.broadcast %cst_20 : f32 to vector<16x32xf32>
    %25 = arith.maximumf %23, %24 : vector<16x32xf32>
    %c0_21 = arith.constant 0 : index
    %c0_22 = arith.constant 0 : index
    %26 = vector.load %arg8[%c0_21, %c0_22] : memref<32x1xf32, #tpu.memory_space<vmem>>, vector<32x1xf32>
    %cst_23 = arith.constant dense<0.000000e+00> : vector<16x1xf32>
    %27 = tpu.matmul %25, %26, %cst_23 {dimension_numbers = #tpu.dot_dimension_numbers<[1], [0], [0], [1], [0, 0, 1, 1], [], []>} : vector<16x32xf32>, vector<32x1xf32>, vector<16x1xf32> -> vector<16x1xf32>
    %c0_24 = arith.constant 0 : index
    %c0_25 = arith.constant 0 : index
    %28 = vector.load %arg7[%c0_24, %c0_25] : memref<16x2xf32, #tpu.memory_space<vmem>>, vector<16x2xf32>
    %29 = vector.broadcast %27 : vector<16x1xf32> to vector<16x2xf32>
    %30 = arith.mulf %29, %28 : vector<16x2xf32>
    %cst_26 = arith.constant dense<0.000000e+00> : vector<2xf32>
    %31 = vector.multi_reduction <add>, %30, %cst_26 [0] : vector<16x2xf32> to vector<2xf32>
    %32 = vector.shape_cast %31 : vector<2xf32> to vector<1x2xf32>
    %c0_27 = arith.constant 0 : index
    %c0_28 = arith.constant 0 : index
    %33 = vector.load %arg9[%c0_27, %c0_28] : memref<1x1xf32, #tpu.memory_space<vmem>>, vector<1x1xf32>
    %34 = vector.broadcast %33 : vector<1x1xf32> to vector<1x2xf32>
    %35 = arith.addf %32, %34 : vector<1x2xf32>
    %c0_29 = arith.constant 0 : index
    %c0_30 = arith.constant 0 : index
    %36 = vector.load %arg10[%c0_29, %c0_30] : memref<1x2xf32, #tpu.memory_space<vmem>>, vector<1x2xf32>
    tpu.vector_store %arg10[%c0_29, %c0_30], %35 {strides = array<i32>} : memref<1x2xf32, #tpu.memory_space<vmem>>, vector<1x2xf32>,
    return
  }
}

</mosaic_0001>

<llo_original>
// kernel: gcn_residue_embedding_forward.1
$region0: #{gcn_residue_embedding_forward.1}
  #allocation0 [shape = 'u32[]', space=smem, size = 0x4, offset = 0x4, fixed_abs, tag = 'smem constant byte address 0x4 - core index']
  #allocation1 [shape = 'u32[144,128]{1,0:T(1,128)}', space=vmem, size = 0x12000, scoped, tag = 'internal scratch']
  #allocation2 [shape = 'f32[1,1]{1,0:T(1,128)S(1)}', space=vmem, size = 0x200, scoped, tag = 'scoped memory for gcn_residue_embedding_forward.1']
  %s0 = inlined_call_operand.vmem [shape: s32[16,1], index: 0, kind: input, shape index: {}]
  %s1 = inlined_call_operand.hbm [shape: f32[20,32], index: 1, kind: input, shape index: {}]
  %s2 = inlined_call_operand.vmem [shape: f32[16,16], index: 2, kind: input, shape index: {}]
  %s3 = inlined_call_operand.vmem [shape: f32[32,32], index: 3, kind: input, shape index: {}]
  %s4 = inlined_call_operand.vmem [shape: f32[1,32], index: 4, kind: input, shape index: {}]
  %s5 = inlined_call_operand.vmem [shape: f32[32,32], index: 5, kind: input, shape index: {}]
  %s6 = inlined_call_operand.hbm [shape: f32[1,32], index: 6, kind: input, shape index: {}]
  %s7 = inlined_call_operand.vmem [shape: f32[16,2], index: 7, kind: input, shape index: {}]
  %s8 = inlined_call_operand.vmem [shape: f32[32,1], index: 8, kind: input, shape index: {}]
  %s9 = inlined_call_operand.<no memory space> [shape: f32[1,1], index: 9, kind: input, shape index: {}]
  %s10 = inlined_call_operand.hbm [shape: f32[1,2], index: 10, kind: output, shape index: {}]
  %s11 = sld [smem:[#allocation0]]
  $region58: #{gcn_residue_embedding_forward.1} parent=0
    _
  %s13 = ssub.s32 1, %s11
  %s14 = scalar_select 0, %s13, %s11
  %v15 = vstv %s9
  %16 = vst [vmem:[#allocation2] sm:$0x1] %v15
  $region1: #{gcn_residue_embedding_forward.1} parent=0
    #allocation3 [shape = 'u8[12288]{0}', space=vmem, size = 0x3000, scoped, tag = 'input window, operand 1, single buffered']
    #allocation4 [shape = 's32[1]{0}', space=sflag, size = 0x4, scoped, tag = 'scoped memory for gcn_residue_embedding_forward.1']
    #allocation5 [shape = 's32[1]{0}', space=sflag, size = 0x4, scoped, tag = 'scoped memory for gcn_residue_embedding_forward.1']
    #allocation6 [shape = 'u8[512]{0}', space=vmem, size = 0x400, scoped, tag = 'input window, operand 6, single buffered']
    #allocation7 [shape = 's32[1]{0}', space=sflag, size = 0x4, scoped, tag = 'scoped memory for gcn_residue_embedding_forward.1']
    #allocation8 [shape = 'u8[512]{0}', space=vmem, size = 0x400, scoped, tag = 'output window, operand 0, single buffered']
    %17 = vsyncpa [#allocation4], 0
    %18 = vsyncpa [#allocation7], 0
    %19 = vsyncpa [#allocation5], 0
    // Predicated region
    $region2: #{gcn_residue_embedding_forward.1} parent=1 // pred_check
      _
    $region3: #{gcn_residue_embedding_forward.1} parent=1 // pred_check_branch
      %21 = sbr.rel (0) target = $region5
    $region4: #{gcn_residue_embedding_forward.1} parent=1 // pred_region
      _
    $region5: #{gcn_residue_embedding_forward.1} parent=1 // pred_fallthru
      _
    // Predicated region
    $region6: #{gcn_residue_embedding_forward.1} parent=1 // pred_check
      _
    $region7: #{gcn_residue_embedding_forward.1} parent=1 // pred_check_branch
      %23 = sbr.rel (0) target = $region9
    $region8: #{gcn_residue_embedding_forward.1} parent=1 // pred_region
      %s25 = ssub.s32 384, 384
      %26 = vsyncadd [#allocation4], %s25
      %s27 = sshll.u32 [#allocation3], 4
      %s28 = int_to_ptr.vmem [resolvable:$true] %s27
      %33 = dma.hbm_to_vmem [thread:$0]  %s1, 384, %s28, [#allocation4], 128, 128, 8
    $region9: #{gcn_residue_embedding_forward.1} parent=1 // pred_fallthru
      _
    // Predicated region
    $region10: #{gcn_residue_embedding_forward.1} parent=1 // pred_check
      _
    $region11: #{gcn_residue_embedding_forward.1} parent=1 // pred_check_branch
      %35 = sbr.rel (0) target = $region13
    $region12: #{gcn_residue_embedding_forward.1} parent=1 // pred_region
      _
    $region13: #{gcn_residue_embedding_forward.1} parent=1 // pred_fallthru
      _
    // Predicated region
    $region14: #{gcn_residue_embedding_forward.1} parent=1 // pred_check
      _
    $region15: #{gcn_residue_embedding_forward.1} parent=1 // pred_check_branch
      %37 = sbr.rel (0) target = $region17
    $region16: #{gcn_residue_embedding_forward.1} parent=1 // pred_region
      _
    $region17: #{gcn_residue_embedding_forward.1} parent=1 // pred_fallthru
      _
    // Predicated region
    $region18: #{gcn_residue_embedding_forward.1} parent=1 // pred_check
      _
    $region19: #{gcn_residue_embedding_forward.1} parent=1 // pred_check_branch
      %39 = sbr.rel (0) target = $region21
    $region20: #{gcn_residue_embedding_forward.1} parent=1 // pred_region
      _
    $region21: #{gcn_residue_embedding_forward.1} parent=1 // pred_fallthru
      _
    // Predicated region
    $region22: #{gcn_residue_embedding_forward.1} parent=1 // pred_check
      _
    $region23: #{gcn_residue_embedding_forward.1} parent=1 // pred_check_branch
      %41 = sbr.rel (0) target = $region25
    $region24: #{gcn_residue_embedding_forward.1} parent=1 // pred_region
      _
    $region25: #{gcn_residue_embedding_forward.1} parent=1 // pred_fallthru
      _
    // Predicated region
    $region26: #{gcn_residue_embedding_forward.1} parent=1 // pred_check
      _
    $region27: #{gcn_residue_embedding_forward.1} parent=1 // pred_check_branch
      %43 = sbr.rel (0) target = $region29
    $region28: #{gcn_residue_embedding_forward.1} parent=1 // pred_region
      %s45 = ssub.s32 16, 16
      %46 = vsyncadd [#allocation7], %s45
      %s48 = sshll.u32 [#allocation6], 4
      %s49 = int_to_ptr.vmem [resolvable:$true] %s48
      %51 = dma.hbm_to_vmem [thread:$0]  %s6, 16, %s49, [#allocation7]
    $region29: #{gcn_residue_embedding_forward.1} parent=1 // pred_fallthru
      _
    // Predicated region
    $region30: #{gcn_residue_embedding_forward.1} parent=1 // pred_check
      _
    $region31: #{gcn_residue_embedding_forward.1} parent=1 // pred_check_branch
      %53 = sbr.rel (0) target = $region33
    $region32: #{gcn_residue_embedding_forward.1} parent=1 // pred_region
      _
    $region33: #{gcn_residue_embedding_forward.1} parent=1 // pred_fallthru
      _
    // Predicated region
    $region34: #{gcn_residue_embedding_forward.1} parent=1 // pred_check
      _
    $region35: #{gcn_residue_embedding_forward.1} parent=1 // pred_check_branch
      %55 = sbr.rel (0) target = $region37
    $region36: #{gcn_residue_embedding_forward.1} parent=1 // pred_region
      _
    $region37: #{gcn_residue_embedding_forward.1} parent=1 // pred_fallthru
      _
    // Predicated region
    $region38: #{gcn_residue_embedding_forward.1} parent=1 // pred_check
      _
    $region39: #{gcn_residue_embedding_forward.1} parent=1 // pred_check_branch
      %57 = sbr.rel (0) target = $region41
    $region40: #{gcn_residue_embedding_forward.1} parent=1 // pred_region
      _
    $region41: #{gcn_residue_embedding_forward.1} parent=1 // pred_fallthru
      _
    // Predicated region
    $region42: #{gcn_residue_embedding_forward.1} parent=1 // pred_check
      _
    $region43: #{gcn_residue_embedding_forward.1} parent=1 // pred_check_branch
      %59 = sbr.rel (0) target = $region45
    $region44: #{gcn_residue_embedding_forward.1} parent=1 // pred_region
      %60 = dma.done [#allocation4], 384
    $region45: #{gcn_residue_embedding_forward.1} parent=1 // pred_fallthru
      _
    // Predicated region
    $region46: #{gcn_residue_embedding_forward.1} parent=1 // pred_check
      _
    $region47: #{gcn_residue_embedding_forward.1} parent=1 // pred_check_branch
      %62 = sbr.rel (0) target = $region49
    $region48: #{gcn_residue_embedding_forward.1} parent=1 // pred_region
      %63 = dma.done [#allocation7], 16
    $region49: #{gcn_residue_embedding_forward.1} parent=1 // pred_fallthru
      _
    %v64 = vld [vmem:[%s0] sm:$0xff]
    %v65 = vld [vmem:[%s0 + $0x8] sm:$0xff]
    %v66 = vlaneseq
    %v67 = vand.u32 %v66, 127
    %68 = vset.pattern.permute.xlu0 0
    %69 = vperm.xlu0 %68, %v64
    %v70 = vpop.permute.xlu0 %69
    %71 = vset.pattern.permute.xlu0 0
    %72 = vperm.xlu0 %71, %v65
    %v73 = vpop.permute.xlu0 %72
    %vm74 = vcmp.eq.s32.totalorder %v70, %v67
    %vm75 = vcmp.eq.s32.totalorder %v73, %v67
    %v76 = vsel %vm74, 1, 0
    %v77 = vsel %vm75, 1, 0
    %v78 = vcvt.s32.f32 %v76
    %v79 = vcvt.s32.f32 %v77
    %v80 = vld [vmem:[#allocation3] sm:$0xff]
    %v81 = vld [vmem:[#allocation3 + $0x8] sm:$0xff]
    %v82 = vld [vmem:[#allocation3 + $0x10] sm:$0xf]
    %vm83 = vcmask 162816
    %v85 = vsel %vm83, %v78, 0
    %v88 = vsel %vm83, %v79, 0
    %vm90 = vcmask 1043456
    %v92 = vsel %vm90, %v82, 0
    %94 = vmatprep.subr.mxu0 0.0
    %95 = vmatpush1.msra.mxu0 %v80
    %96 = vmatprep.subr.mxu0 0.0
    %97 = vmatpush1.msra.mxu0 %v81
    %98 = vmatprep.subr.mxu0 0.0
    %99 = vmatpush1.msra.mxu0 %v92
    %100 = vmatprep.subr.mxu0 0.0
    %101 = vmatpush1.msra.mxu0 0.0
    %102 = vmatprep.subr.mxu0 0.0
    %103 = vmatpush1.msra.mxu0 0.0
    %104 = vmatprep.subr.mxu0 0.0
    %105 = vmatpush1.msra.mxu0 0.0
    %106 = vmatprep.subr.mxu0 0.0
    %107 = vmatpush1.msra.mxu0 0.0
    %108 = vmatprep.subr.mxu0 0.0
    %109 = vmatpush1.msra.mxu0 0.0
    %110 = vmatprep.subr.mxu0 0.0
    %111 = vmatpush1.msra.mxu0 0.0
    %112 = vmatprep.subr.mxu0 0.0
    %113 = vmatpush1.msra.mxu0 0.0
    %114 = vmatprep.subr.mxu0 0.0
    %115 = vmatpush1.msra.mxu0 0.0
    %116 = vmatprep.subr.mxu0 0.0
    %117 = vmatpush1.msra.mxu0 0.0
    %118 = vmatprep.subr.mxu0 0.0
    %119 = vmatpush1.msra.mxu0 0.0
    %120 = vmatprep.subr.mxu0 0.0
    %121 = vmatpush1.msra.mxu0 0.0
    %122 = vmatprep.subr.mxu0 0.0
    %123 = vmatpush1.msra.mxu0 0.0
    %124 = vmatprep.subr.mxu0 0.0
    %125 = vmatpush1.msra.mxu0 0.0
    %126 = vmatprep.subr.mxu0 0.0
    %127 = vmatpush1.msra.mxu0 0.0
    %128 = vmatprep.subr.mxu0 0.0
    %129 = vmatpush1.msra.mxu0 0.0
    %130 = vmatprep.subr.mxu0 0.0
    %131 = vmatpush1.msra.mxu0 0.0
    %132 = vmatprep.subr.mxu0 0.0
    %133 = vmatpush1.msra.mxu0 0.0
    %134 = vmatprep.subr.mxu0 0.0
    %135 = vmatpush1.msra.mxu0 0.0
    %136 = vmatprep.subr.mxu0 0.0
    %137 = vmatpush1.msra.mxu0 0.0
    %138 = vmatprep.subr.mxu0 0.0
    %139 = vmatpush1.msra.mxu0 0.0
    %140 = vmatprep.subr.mxu0 0.0
    %141 = vmatpush1.msra.mxu0 0.0
    %142 = vmatprep.subr.mxu0 0.0
    %143 = vmatpush1.msra.mxu0 0.0
    %144 = vmatprep.subr.mxu0 0.0
    %145 = vmatpush1.msra.mxu0 0.0
    %146 = vmatprep.subr.mxu0 0.0
    %147 = vmatpush1.msra.mxu0 0.0
    %148 = vmatprep.subr.mxu0 0.0
    %149 = vmatpush1.msra.mxu0 0.0
    %150 = vmatprep.subr.mxu0 0.0
    %151 = vmatpush1.msra.mxu0 0.0
    %152 = vmatprep.subr.mxu0 0.0
    %153 = vmatpush1.msra.mxu0 0.0
    %154 = vmatprep.subr.mxu0 0.0
    %155 = vmatpush1.msra.mxu0 0.0
    %156 = vmatprep.subr.mxu0 0.0
    %157 = vmatpush1.msra.mxu0 0.0
    %158 = vmatprep.mubr.f32.mxu0 0.0
    %159 = vmatmul.mubr.f32.gmra.mrb[0].mxu0 %v85
    %v160 = vpop.f32.mrb[0].mxu0
    %v161 = vadd.f32 0.0, %v160
    %v162 = vpop.f32.mrb[0].mxu0
    %163 = vmatprep.mubr.f32.mxu0 0.0
    %164 = vmatmul.mubr.f32.gmra.mrb[0].mxu0 %v88
    %v165 = vpop.f32.mrb[0].mxu0
    %v166 = vadd.f32 0.0, %v165
    %v167 = vpop.f32.mrb[0].mxu0
    %168 = vdwg.mxu0
    %v169 = vld [vmem:[%s3] sm:$0xff]
    %v170 = vld [vmem:[%s3 + $0x8] sm:$0xff]
    %v171 = vld [vmem:[%s3 + $0x10] sm:$0xff]
    %v172 = vld [vmem:[%s3 + $0x18] sm:$0xff]
    %vm173 = vcmask 261120
    %v175 = vsel %vm173, %v161, 0
    %v178 = vsel %vm173, %v166, 0
    %180 = vmatprep.subr.mxu0 0.0
    %181 = vmatpush1.msra.mxu0 %v169
    %182 = vmatprep.subr.mxu0 0.0
    %183 = vmatpush1.msra.mxu0 %v170
    %184 = vmatprep.subr.mxu0 0.0
    %185 = vmatpush1.msra.mxu0 %v171
    %186 = vmatprep.subr.mxu0 0.0
    %187 = vmatpush1.msra.mxu0 %v172
    %188 = vmatprep.subr.mxu0 0.0
    %189 = vmatpush1.msra.mxu0 0.0
    %190 = vmatprep.subr.mxu0 0.0
    %191 = vmatpush1.msra.mxu0 0.0
    %192 = vmatprep.subr.mxu0 0.0
    %193 = vmatpush1.msra.mxu0 0.0
    %194 = vmatprep.subr.mxu0 0.0
    %195 = vmatpush1.msra.mxu0 0.0
    %196 = vmatprep.subr.mxu0 0.0
    %197 = vmatpush1.msra.mxu0 0.0
    %198 = vmatprep.subr.mxu0 0.0
    %199 = vmatpush1.msra.mxu0 0.0
    %200 = vmatprep.subr.mxu0 0.0
    %201 = vmatpush1.msra.mxu0 0.0
    %202 = vmatprep.subr.mxu0 0.0
    %203 = vmatpush1.msra.mxu0 0.0
    %204 = vmatprep.subr.mxu0 0.0
    %205 = vmatpush1.msra.mxu0 0.0
    %206 = vmatprep.subr.mxu0 0.0
    %207 = vmatpush1.msra.mxu0 0.0
    %208 = vmatprep.subr.mxu0 0.0
    %209 = vmatpush1.msra.mxu0 0.0
    %210 = vmatprep.subr.mxu0 0.0
    %211 = vmatpush1.msra.mxu0 0.0
    %212 = vmatprep.subr.mxu0 0.0
    %213 = vmatpush1.msra.mxu0 0.0
    %214 = vmatprep.subr.mxu0 0.0
    %215 = vmatpush1.msra.mxu0 0.0
    %216 = vmatprep.subr.mxu0 0.0
    %217 = vmatpush1.msra.mxu0 0.0
    %218 = vmatprep.subr.mxu0 0.0
    %219 = vmatpush1.msra.mxu0 0.0
    %220 = vmatprep.subr.mxu0 0.0
    %221 = vmatpush1.msra.mxu0 0.0
    %222 = vmatprep.subr.mxu0 0.0
    %223 = vmatpush1.msra.mxu0 0.0
    %224 = vmatprep.subr.mxu0 0.0
    %225 = vmatpush1.msra.mxu0 0.0
    %226 = vmatprep.subr.mxu0 0.0
    %227 = vmatpush1.msra.mxu0 0.0
    %228 = vmatprep.subr.mxu0 0.0
    %229 = vmatpush1.msra.mxu0 0.0
    %230 = vmatprep.subr.mxu0 0.0
    %231 = vmatpush1.msra.mxu0 0.0
    %232 = vmatprep.subr.mxu0 0.0
    %233 = vmatpush1.msra.mxu0 0.0
    %234 = vmatprep.subr.mxu0 0.0
    %235 = vmatpush1.msra.mxu0 0.0
    %236 = vmatprep.subr.mxu0 0.0
    %237 = vmatpush1.msra.mxu0 0.0
    %238 = vmatprep.subr.mxu0 0.0
    %239 = vmatpush1.msra.mxu0 0.0
    %240 = vmatprep.subr.mxu0 0.0
    %241 = vmatpush1.msra.mxu0 0.0
    %242 = vmatprep.subr.mxu0 0.0
    %243 = vmatpush1.msra.mxu0 0.0
    %244 = vmatprep.mubr.f32.mxu0 0.0
    %245 = vmatmul.mubr.f32.gmra.mrb[0].mxu0 %v175
    %v246 = vpop.f32.mrb[0].mxu0
    %v247 = vadd.f32 0.0, %v246
    %v248 = vpop.f32.mrb[0].mxu0
    %249 = vmatprep.mubr.f32.mxu0 0.0
    %250 = vmatmul.mubr.f32.gmra.mrb[0].mxu0 %v178
    %v251 = vpop.f32.mrb[0].mxu0
    %v252 = vadd.f32 0.0, %v251
    %v253 = vpop.f32.mrb[0].mxu0
    %254 = vdwg.mxu0
    %v255 = vld [vmem:[%s2] sm:$0xff]
    %v256 = vld [vmem:[%s2 + $0x8] sm:$0xff]
    %v257 = vld [vmem:[%s4] sm:$0x1]
    %v259 = vlaneseq
    %v260 = vshrl.u32 %v259, 7
    %v261 = vsub.s32 0, %v260
    %v262 = vrot.slane %v257, %v261
    %vm264 = vcmask 130048
    %v266 = vsel %vm264, %v255, 0
    %v269 = vsel %vm264, %v256, 0
    %271 = vmatprep.subr.mxu0 0.0
    %272 = vmatpush1.msra.mxu0 %v247
    %273 = vmatprep.subr.mxu0 0.0
    %274 = vmatpush1.msra.mxu0 %v252
    %275 = vmatprep.subr.mxu0 0.0
    %276 = vmatpush1.msra.mxu0 0.0
    %277 = vmatprep.subr.mxu0 0.0
    %278 = vmatpush1.msra.mxu0 0.0
    %279 = vmatprep.subr.mxu0 0.0
    %280 = vmatpush1.msra.mxu0 0.0
    %281 = vmatprep.subr.mxu0 0.0
    %282 = vmatpush1.msra.mxu0 0.0
    %283 = vmatprep.subr.mxu0 0.0
    %284 = vmatpush1.msra.mxu0 0.0
    %285 = vmatprep.subr.mxu0 0.0
    %286 = vmatpush1.msra.mxu0 0.0
    %287 = vmatprep.subr.mxu0 0.0
    %288 = vmatpush1.msra.mxu0 0.0
    %289 = vmatprep.subr.mxu0 0.0
    %290 = vmatpush1.msra.mxu0 0.0
    %291 = vmatprep.subr.mxu0 0.0
    %292 = vmatpush1.msra.mxu0 0.0
    %293 = vmatprep.subr.mxu0 0.0
    %294 = vmatpush1.msra.mxu0 0.0
    %295 = vmatprep.subr.mxu0 0.0
    %296 = vmatpush1.msra.mxu0 0.0
    %297 = vmatprep.subr.mxu0 0.0
    %298 = vmatpush1.msra.mxu0 0.0
    %299 = vmatprep.subr.mxu0 0.0
    %300 = vmatpush1.msra.mxu0 0.0
    %301 = vmatprep.subr.mxu0 0.0
    %302 = vmatpush1.msra.mxu0 0.0
    %303 = vmatprep.subr.mxu0 0.0
    %304 = vmatpush1.msra.mxu0 0.0
    %305 = vmatprep.subr.mxu0 0.0
    %306 = vmatpush1.msra.mxu0 0.0
    %307 = vmatprep.subr.mxu0 0.0
    %308 = vmatpush1.msra.mxu0 0.0
    %309 = vmatprep.subr.mxu0 0.0
    %310 = vmatpush1.msra.mxu0 0.0
    %311 = vmatprep.subr.mxu0 0.0
    %312 = vmatpush1.msra.mxu0 0.0
    %313 = vmatprep.subr.mxu0 0.0
    %314 = vmatpush1.msra.mxu0 0.0
    %315 = vmatprep.subr.mxu0 0.0
    %316 = vmatpush1.msra.mxu0 0.0
    %317 = vmatprep.subr.mxu0 0.0
    %318 = vmatpush1.msra.mxu0 0.0
    %319 = vmatprep.subr.mxu0 0.0
    %320 = vmatpush1.msra.mxu0 0.0
    %321 = vmatprep.subr.mxu0 0.0
    %322 = vmatpush1.msra.mxu0 0.0
    %323 = vmatprep.subr.mxu0 0.0
    %324 = vmatpush1.msra.mxu0 0.0
    %325 = vmatprep.subr.mxu0 0.0
    %326 = vmatpush1.msra.mxu0 0.0
    %327 = vmatprep.subr.mxu0 0.0
    %328 = vmatpush1.msra.mxu0 0.0
    %329 = vmatprep.subr.mxu0 0.0
    %330 = vmatpush1.msra.mxu0 0.0
    %331 = vmatprep.subr.mxu0 0.0
    %332 = vmatpush1.msra.mxu0 0.0
    %333 = vmatprep.subr.mxu0 0.0
    %334 = vmatpush1.msra.mxu0 0.0
    %335 = vmatprep.mubr.f32.mxu0 0.0
    %336 = vmatmul.mubr.f32.gmra.mrb[0].mxu0 %v266
    %v337 = vpop.f32.mrb[0].mxu0
    %v338 = vadd.f32 %v262, %v337
    %v339 = vpop.f32.mrb[0].mxu0
    %340 = vmatprep.mubr.f32.mxu0 0.0
    %341 = vmatmul.mubr.f32.gmra.mrb[0].mxu0 %v269
    %v342 = vpop.f32.mrb[0].mxu0
    %v343 = vadd.f32 %v262, %v342
    %v344 = vpop.f32.mrb[0].mxu0
    %345 = vdwg.mxu0
    %v346 = vmax.f32 %v338, 0.0
    %v347 = vmax.f32 %v343, 0.0
    %v348 = vld [vmem:[%s5] sm:$0xff]
    %v349 = vld [vmem:[%s5 + $0x8] sm:$0xff]
    %v350 = vld [vmem:[%s5 + $0x10] sm:$0xff]
    %v351 = vld [vmem:[%s5 + $0x18] sm:$0xff]
    %v353 = vsel %vm173, %v346, 0
    %v356 = vsel %vm173, %v347, 0
    %358 = vmatprep.subr.mxu0 0.0
    %359 = vmatpush1.msra.mxu0 %v348
    %360 = vmatprep.subr.mxu0 0.0
    %361 = vmatpush1.msra.mxu0 %v349
    %362 = vmatprep.subr.mxu0 0.0
    %363 = vmatpush1.msra.mxu0 %v350
    %364 = vmatprep.subr.mxu0 0.0
    %365 = vmatpush1.msra.mxu0 %v351
    %366 = vmatprep.subr.mxu0 0.0
    %367 = vmatpush1.msra.mxu0 0.0
    %368 = vmatprep.subr.mxu0 0.0
    %369 = vmatpush1.msra.mxu0 0.0
    %370 = vmatprep.subr.mxu0 0.0
    %371 = vmatpush1.msra.mxu0 0.0
    %372 = vmatprep.subr.mxu0 0.0
    %373 = vmatpush1.msra.mxu0 0.0
    %374 = vmatprep.subr.mxu0 0.0
    %375 = vmatpush1.msra.mxu0 0.0
    %376 = vmatprep.subr.mxu0 0.0
    %377 = vmatpush1.msra.mxu0 0.0
    %378 = vmatprep.subr.mxu0 0.0
    %379 = vmatpush1.msra.mxu0 0.0
    %380 = vmatprep.subr.mxu0 0.0
    %381 = vmatpush1.msra.mxu0 0.0
    %382 = vmatprep.subr.mxu0 0.0
    %383 = vmatpush1.msra.mxu0 0.0
    %384 = vmatprep.subr.mxu0 0.0
    %385 = vmatpush1.msra.mxu0 0.0
    %386 = vmatprep.subr.mxu0 0.0
    %387 = vmatpush1.msra.mxu0 0.0
    %388 = vmatprep.subr.mxu0 0.0
    %389 = vmatpush1.msra.mxu0 0.0
    %390 = vmatprep.subr.mxu0 0.0
    %391 = vmatpush1.msra.mxu0 0.0
    %392 = vmatprep.subr.mxu0 0.0
    %393 = vmatpush1.msra.mxu0 0.0
    %394 = vmatprep.subr.mxu0 0.0
    %395 = vmatpush1.msra.mxu0 0.0
    %396 = vmatprep.subr.mxu0 0.0
    %397 = vmatpush1.msra.mxu0 0.0
    %398 = vmatprep.subr.mxu0 0.0
    %399 = vmatpush1.msra.mxu0 0.0
    %400 = vmatprep.subr.mxu0 0.0
    %401 = vmatpush1.msra.mxu0 0.0
    %402 = vmatprep.subr.mxu0 0.0
    %403 = vmatpush1.msra.mxu0 0.0
    %404 = vmatprep.subr.mxu0 0.0
    %405 = vmatpush1.msra.mxu0 0.0
    %406 = vmatprep.subr.mxu0 0.0
    %407 = vmatpush1.msra.mxu0 0.0
    %408 = vmatprep.subr.mxu0 0.0
    %409 = vmatpush1.msra.mxu0 0.0
    %410 = vmatprep.subr.mxu0 0.0
    %411 = vmatpush1.msra.mxu0 0.0
    %412 = vmatprep.subr.mxu0 0.0
    %413 = vmatpush1.msra.mxu0 0.0
    %414 = vmatprep.subr.mxu0 0.0
    %415 = vmatpush1.msra.mxu0 0.0
    %416 = vmatprep.subr.mxu0 0.0
    %417 = vmatpush1.msra.mxu0 0.0
    %418 = vmatprep.subr.mxu0 0.0
    %419 = vmatpush1.msra.mxu0 0.0
    %420 = vmatprep.subr.mxu0 0.0
    %421 = vmatpush1.msra.mxu0 0.0
    %422 = vmatprep.mubr.f32.mxu0 0.0
    %423 = vmatmul.mubr.f32.gmra.mrb[0].mxu0 %v353
    %v424 = vpop.f32.mrb[0].mxu0
    %v425 = vadd.f32 0.0, %v424
    %v426 = vpop.f32.mrb[0].mxu0
    %427 = vmatprep.mubr.f32.mxu0 0.0
    %428 = vmatmul.mubr.f32.gmra.mrb[0].mxu0 %v356
    %v429 = vpop.f32.mrb[0].mxu0
    %v430 = vadd.f32 0.0, %v429
    %v431 = vpop.f32.mrb[0].mxu0
    %432 = vdwg.mxu0
    %v433 = vld [vmem:[#allocation6] sm:$0x1]
    %v435 = vlaneseq
    %v436 = vshrl.u32 %v435, 7
    %v437 = vsub.s32 0, %v436
    %v438 = vrot.slane %v433, %v437
    %440 = vmatprep.subr.mxu0 0.0
    %441 = vmatpush1.msra.mxu0 %v425
    %442 = vmatprep.subr.mxu0 0.0
    %443 = vmatpush1.msra.mxu0 %v430
    %444 = vmatprep.subr.mxu0 0.0
    %445 = vmatpush1.msra.mxu0 0.0
    %446 = vmatprep.subr.mxu0 0.0
    %447 = vmatpush1.msra.mxu0 0.0
    %448 = vmatprep.subr.mxu0 0.0
    %449 = vmatpush1.msra.mxu0 0.0
    %450 = vmatprep.subr.mxu0 0.0
    %451 = vmatpush1.msra.mxu0 0.0
    %452 = vmatprep.subr.mxu0 0.0
    %453 = vmatpush1.msra.mxu0 0.0
    %454 = vmatprep.subr.mxu0 0.0
    %455 = vmatpush1.msra.mxu0 0.0
    %456 = vmatprep.subr.mxu0 0.0
    %457 = vmatpush1.msra.mxu0 0.0
    %458 = vmatprep.subr.mxu0 0.0
    %459 = vmatpush1.msra.mxu0 0.0
    %460 = vmatprep.subr.mxu0 0.0
    %461 = vmatpush1.msra.mxu0 0.0
    %462 = vmatprep.subr.mxu0 0.0
    %463 = vmatpush1.msra.mxu0 0.0
    %464 = vmatprep.subr.mxu0 0.0
    %465 = vmatpush1.msra.mxu0 0.0
    %466 = vmatprep.subr.mxu0 0.0
    %467 = vmatpush1.msra.mxu0 0.0
    %468 = vmatprep.subr.mxu0 0.0
    %469 = vmatpush1.msra.mxu0 0.0
    %470 = vmatprep.subr.mxu0 0.0
    %471 = vmatpush1.msra.mxu0 0.0
    %472 = vmatprep.subr.mxu0 0.0
    %473 = vmatpush1.msra.mxu0 0.0
    %474 = vmatprep.subr.mxu0 0.0
    %475 = vmatpush1.msra.mxu0 0.0
    %476 = vmatprep.subr.mxu0 0.0
    %477 = vmatpush1.msra.mxu0 0.0
    %478 = vmatprep.subr.mxu0 0.0
    %479 = vmatpush1.msra.mxu0 0.0
    %480 = vmatprep.subr.mxu0 0.0
    %481 = vmatpush1.msra.mxu0 0.0
    %482 = vmatprep.subr.mxu0 0.0
    %483 = vmatpush1.msra.mxu0 0.0
    %484 = vmatprep.subr.mxu0 0.0
    %485 = vmatpush1.msra.mxu0 0.0
    %486 = vmatprep.subr.mxu0 0.0
    %487 = vmatpush1.msra.mxu0 0.0
    %488 = vmatprep.subr.mxu0 0.0
    %489 = vmatpush1.msra.mxu0 0.0
    %490 = vmatprep.subr.mxu0 0.0
    %491 = vmatpush1.msra.mxu0 0.0
    %492 = vmatprep.subr.mxu0 0.0
    %493 = vmatpush1.msra.mxu0 0.0
    %494 = vmatprep.subr.mxu0 0.0
    %495 = vmatpush1.msra.mxu0 0.0
    %496 = vmatprep.subr.mxu0 0.0
    %497 = vmatpush1.msra.mxu0 0.0
    %498 = vmatprep.subr.mxu0 0.0
    %499 = vmatpush1.msra.mxu0 0.0
    %500 = vmatprep.subr.mxu0 0.0
    %501 = vmatpush1.msra.mxu0 0.0
    %502 = vmatprep.subr.mxu0 0.0
    %503 = vmatpush1.msra.mxu0 0.0
    %504 = vmatprep.mubr.f32.mxu0 0.0
    %505 = vmatmul.mubr.f32.gmra.mrb[0].mxu0 %v266
    %v506 = vpop.f32.mrb[0].mxu0
    %v507 = vadd.f32 %v438, %v506
    %v508 = vpop.f32.mrb[0].mxu0
    %509 = vmatprep.mubr.f32.mxu0 0.0
    %510 = vmatmul.mubr.f32.gmra.mrb[0].mxu0 %v269
    %v511 = vpop.f32.mrb[0].mxu0
    %v512 = vadd.f32 %v438, %v511
    %v513 = vpop.f32.mrb[0].mxu0
    %514 = vdwg.mxu0
    %v515 = vmax.f32 %v507, 0.0
    %v516 = vmax.f32 %v512, 0.0
    %v517 = vld [vmem:[%s8] sm:$0xff]
    %v518 = vld [vmem:[%s8 + $0x8] sm:$0xff]
    %v519 = vld [vmem:[%s8 + $0x10] sm:$0xff]
    %v520 = vld [vmem:[%s8 + $0x18] sm:$0xff]
    %v522 = vsel %vm173, %v515, 0
    %v525 = vsel %vm173, %v516, 0
    %527 = vmatprep.subr.mxu0 0.0
    %528 = vmatpush1.msra.mxu0 %v517
    %529 = vmatprep.subr.mxu0 0.0
    %530 = vmatpush1.msra.mxu0 %v518
    %531 = vmatprep.subr.mxu0 0.0
    %532 = vmatpush1.msra.mxu0 %v519
    %533 = vmatprep.subr.mxu0 0.0
    %534 = vmatpush1.msra.mxu0 %v520
    %535 = vmatprep.subr.mxu0 0.0
    %536 = vmatpush1.msra.mxu0 0.0
    %537 = vmatprep.subr.mxu0 0.0
    %538 = vmatpush1.msra.mxu0 0.0
    %539 = vmatprep.subr.mxu0 0.0
    %540 = vmatpush1.msra.mxu0 0.0
    %541 = vmatprep.subr.mxu0 0.0
    %542 = vmatpush1.msra.mxu0 0.0
    %543 = vmatprep.subr.mxu0 0.0
    %544 = vmatpush1.msra.mxu0 0.0
    %545 = vmatprep.subr.mxu0 0.0
    %546 = vmatpush1.msra.mxu0 0.0
    %547 = vmatprep.subr.mxu0 0.0
    %548 = vmatpush1.msra.mxu0 0.0
    %549 = vmatprep.subr.mxu0 0.0
    %550 = vmatpush1.msra.mxu0 0.0
    %551 = vmatprep.subr.mxu0 0.0
    %552 = vmatpush1.msra.mxu0 0.0
    %553 = vmatprep.subr.mxu0 0.0
    %554 = vmatpush1.msra.mxu0 0.0
    %555 = vmatprep.subr.mxu0 0.0
    %556 = vmatpush1.msra.mxu0 0.0
    %557 = vmatprep.subr.mxu0 0.0
    %558 = vmatpush1.msra.mxu0 0.0
    %559 = vmatprep.subr.mxu0 0.0
    %560 = vmatpush1.msra.mxu0 0.0
    %561 = vmatprep.subr.mxu0 0.0
    %562 = vmatpush1.msra.mxu0 0.0
    %563 = vmatprep.subr.mxu0 0.0
    %564 = vmatpush1.msra.mxu0 0.0
    %565 = vmatprep.subr.mxu0 0.0
    %566 = vmatpush1.msra.mxu0 0.0
    %567 = vmatprep.subr.mxu0 0.0
    %568 = vmatpush1.msra.mxu0 0.0
    %569 = vmatprep.subr.mxu0 0.0
    %570 = vmatpush1.msra.mxu0 0.0
    %571 = vmatprep.subr.mxu0 0.0
    %572 = vmatpush1.msra.mxu0 0.0
    %573 = vmatprep.subr.mxu0 0.0
    %574 = vmatpush1.msra.mxu0 0.0
    %575 = vmatprep.subr.mxu0 0.0
    %576 = vmatpush1.msra.mxu0 0.0
    %577 = vmatprep.subr.mxu0 0.0
    %578 = vmatpush1.msra.mxu0 0.0
    %579 = vmatprep.subr.mxu0 0.0
    %580 = vmatpush1.msra.mxu0 0.0
    %581 = vmatprep.subr.mxu0 0.0
    %582 = vmatpush1.msra.mxu0 0.0
    %583 = vmatprep.subr.mxu0 0.0
    %584 = vmatpush1.msra.mxu0 0.0
    %585 = vmatprep.subr.mxu0 0.0
    %586 = vmatpush1.msra.mxu0 0.0
    %587 = vmatprep.subr.mxu0 0.0
    %588 = vmatpush1.msra.mxu0 0.0
    %589 = vmatprep.subr.mxu0 0.0
    %590 = vmatpush1.msra.mxu0 0.0
    %591 = vmatprep.mubr.f32.mxu0 0.0
    %592 = vmatmul.mubr.f32.gmra.mrb[0].mxu0 %v522
    %v593 = vpop.f32.mrb[0].mxu0
    %v594 = vadd.f32 0.0, %v593
    %v595 = vpop.f32.mrb[0].mxu0
    %596 = vmatprep.mubr.f32.mxu0 0.0
    %597 = vmatmul.mubr.f32.gmra.mrb[0].mxu0 %v525
    %v598 = vpop.f32.mrb[0].mxu0
    %v599 = vadd.f32 0.0, %v598
    %v600 = vpop.f32.mrb[0].mxu0
    %601 = vdwg.mxu0
    %v602 = vld [vmem:[%s7] sm:$0xff]
    %v603 = vld [vmem:[%s7 + $0x8] sm:$0xff]
    %605 = vset.pattern.permute.xlu0 0
    %606 = vperm.xlu0 %605, %v594
    %v607 = vpop.permute.xlu0 %606
    %610 = vset.pattern.permute.xlu0 0
    %611 = vperm.xlu0 %610, %v599
    %v612 = vpop.permute.xlu0 %611
    %v614 = vmul.f32 %v607, %v602
    %v615 = vmul.f32 %v612, %v603
    %vm616 = vcmask 15360
    %v617 = vsel %vm616, %v614, 0.0
    %v618 = vsel %vm616, %v615, 0.0
    %v619 = vadd.f32 %v617, %v618
    %v620 = vrot.slane %v619, 4
    %v621 = vadd.f32 %v619, %v620
    %v622 = vrot.slane %v621, 2
    %v623 = vadd.f32 %v621, %v622
    %v624 = vrot.slane %v623, 1
    %v625 = vadd.f32 %v623, %v624
    %v626 = vld [vmem:[#allocation2] sm:$0x1]
    %628 = vset.pattern.permute.xlu0 0
    %629 = vperm.xlu0 %628, %v626
    %v630 = vpop.permute.xlu0 %629
    %v632 = vlaneseq
    %v633 = vshrl.u32 %v632, 7
    %v634 = vsub.s32 0, %v633
    %v635 = vrot.slane %v630, %v634
    %v636 = vadd.f32 %v625, %v635
    %vm637 = vcmask 8192
    %638 = vst.msk [vmem:[#allocation8] sm:$0x1] %vm637, %v636
    // Predicated region
    $region50: #{gcn_residue_embedding_forward.1} parent=1 // pred_check
      _
    $region51: #{gcn_residue_embedding_forward.1} parent=1 // pred_check_branch
      %640 = sbr.rel (0) target = $region53
    $region52: #{gcn_residue_embedding_forward.1} parent=1 // pred_region
      %s642 = ssub.s32 16, 16
      %643 = vsyncadd [#allocation5], %s642
      %s645 = sshll.u32 [#allocation8], 4
      %s646 = int_to_ptr.vmem [resolvable:$true] %s645
      %648 = dma.vmem_to_hbm [thread:$0]  %s646, 16, %s10, [#allocation5]
    $region53: #{gcn_residue_embedding_forward.1} parent=1 // pred_fallthru
      _
    // Predicated region
    $region54: #{gcn_residue_embedding_forward.1} parent=1 // pred_check
      _
    $region55: #{gcn_residue_embedding_forward.1} parent=1 // pred_check_branch
      %650 = sbr.rel (0) target = $region57
    $region56: #{gcn_residue_embedding_forward.1} parent=1 // pred_region
      %651 = dma.done [#allocation5], 16
    $region57: #{gcn_residue_embedding_forward.1} parent=1 // pred_fallthru
      _
    %652 = vsyncpa [#allocation4], 1
    %653 = vsyncpa [#allocation7], 1
    %654 = vsyncpa [#allocation5], 1

</llo_original>
